<compile_context>
chip_gen: v6e
topology: v6e:2x2x1
jax: 0.10.0
libtpu: 0.0.40
codegen_flags: <defaults>
</compile_context>

<pallas_src>
import functools

import jax
import jax.numpy as jnp
from jax.experimental import pallas as pl
from jax.experimental.pallas import tpu as pltpu


# ----------------------------- kernel helpers ------------------------------


def _attn_logits(x, w1_ref, b1_ref, w2_ref, b2_ref, *, K, vpu_head):
    """tanh(x @ W1 + b1) @ W2 + b2  ->  (rows, K) float32 logits."""
    h = jnp.tanh(
        jnp.dot(x, w1_ref[...], preferred_element_type=jnp.float32) + b1_ref[...]
    )
    if vpu_head:
        # K is tiny: an (rows, D) x (D, K) MXU matmul would push a vmatmul and
        # then drain a K-lane-wide result (~0% MXU utilization).  Do it on the
        # VPU (elementwise mul) + XLU (lane reduce) instead; w2 arrives
        # pre-transposed as (K, D) so each row is lane-dense.
        w2t = w2_ref[...]                                      # (K, D)
        cols = []
        for k in range(K):                                     # K is static & small
            col = jnp.sum(h * w2t[k:k + 1, :], axis=1, keepdims=True)
            cols.append(col + b2_ref[k])                       # b2[k]: SMEM scalar
        a = cols[0] if K == 1 else jnp.concatenate(cols, axis=1)
    else:
        a = (
            jnp.dot(h, w2_ref[...], preferred_element_type=jnp.float32)
            + b2_ref[...]
        )
    return a


def _softmax_over_instances(a):
    # Softmax over axis=0 (the N instances, sublane axis) -- no transpose.
    m = jnp.max(a, axis=0, keepdims=True)
    e = jnp.exp(a - m)
    # Exact reciprocal (approx=True could exceed the 1e-5 test tolerance).
    return e * pl.reciprocal(jnp.sum(e, axis=0, keepdims=True))


# --------------------------------- kernels ---------------------------------


def _attention2_kernel_single(x_ref, w1_ref, b1_ref, w2_ref, b2_ref, out_ref,
                              *, K, vpu_head, normalize):
    a = _attn_logits(x_ref[...], w1_ref, b1_ref, w2_ref, b2_ref,
                     K=K, vpu_head=vpu_head)
    if normalize:
        a = _softmax_over_instances(a)
    out_ref[...] = a.astype(out_ref.dtype)


def _attention2_kernel_tiled(x_ref, w1_ref, b1_ref, w2_ref, b2_ref, out_ref,
                             *, K, vpu_head, normalize, block_n):
    i = pl.program_id(0)
    a = _attn_logits(x_ref[...], w1_ref, b1_ref, w2_ref, b2_ref,
                     K=K, vpu_head=vpu_head)
    # Stage this tile's raw logits into the grid-resident (N, K) output block.
    row0 = pl.multiple_of(i * block_n, block_n)
    out_ref[pl.ds(row0, block_n), :] = a.astype(out_ref.dtype)

    if normalize:
        @pl.when(i == pl.num_programs(0) - 1)
        def _finalize():
            out_ref[...] = _softmax_over_instances(out_ref[...]).astype(out_ref.dtype)


# --------------------------------- wrapper ---------------------------------


def attention2_pallas(x, w1, b1, w2, b2, *, normalize=True, block_n=None):
    """Forward of Attention2; returns (K, N) like the PyTorch module."""
    N, L = x.shape
    D = w1.shape[1]
    K = w2.shape[1]
    vpu_head = K <= 8

    x = jnp.asarray(x, jnp.float32)
    w1 = jnp.asarray(w1, jnp.float32)
    b1 = jnp.asarray(b1, jnp.float32).reshape(1, D)
    if vpu_head:
        w2_arg = jnp.asarray(w2, jnp.float32).T              # (K, D): lane-dense rows
        b2_arg = jnp.asarray(b2, jnp.float32).reshape(K)     # -> SMEM scalars
    else:
        w2_arg = jnp.asarray(w2, jnp.float32)                # (D, K): MXU path
        b2_arg = jnp.asarray(b2, jnp.float32).reshape(1, K)

    # ---- tile choice along N (full block when it already fits) ------------
    if block_n is None:
        if N <= 256:
            block_n = N
        else:
            block_n = next((t for t in (256, 128, 64, 32, 16, 8) if N % t == 0), N)
    block_n = min(int(block_n), N)
    if N % block_n != 0 or (block_n != N and block_n % 8 != 0):
        block_n = N                                          # fall back: single block
    num_tiles = N // block_n

    # Advisory cost so XLA schedules this small custom call sensibly.
    cost = pl.CostEstimate(
        flops=2 * N * L * D + 2 * N * D * K + 6 * N * K,
        transcendentals=N * D + N * K,                       # tanh + exp
        bytes_accessed=4 * (N * L + L * D + D + D * K + K + N * K),
    )
    vmem_needed = 4 * (2 * block_n * L + L * D + 8 * D + 8 * D * max(K, 1) + N * K)
    vmem_limit = int(min(32 << 20, max(vmem_needed + (2 << 20), 16 << 20)))

    out_shape = jax.ShapeDtypeStruct((N, K), jnp.float32)

    def _vmem_spec():
        return pl.BlockSpec(memory_space=pltpu.MemorySpace.VMEM)

    def _smem_spec():
        return pl.BlockSpec(memory_space=pltpu.MemorySpace.SMEM)

    if num_tiles == 1:
        # Single block: no grid -> no per-step pipeline prologue/epilogue.
        kernel = functools.partial(
            _attention2_kernel_single, K=K, vpu_head=vpu_head, normalize=normalize)
        b2_spec = _smem_spec() if vpu_head else _vmem_spec()
        out_nk = pl.pallas_call(
            kernel,
            out_shape=out_shape,
            in_specs=[_vmem_spec(), _vmem_spec(), _vmem_spec(), _vmem_spec(), b2_spec],
            out_specs=_vmem_spec(),
            compiler_params=pltpu.CompilerParams(vmem_limit_bytes=vmem_limit),
            cost_estimate=cost,
        )(x, w1, b1, w2_arg, b2_arg)
    else:
        kernel = functools.partial(
            _attention2_kernel_tiled, K=K, vpu_head=vpu_head,
            normalize=normalize, block_n=block_n)
        w2_block = (K, D) if vpu_head else (D, K)
        b2_spec = _smem_spec() if vpu_head else pl.BlockSpec((1, K), lambda i: (0, 0))
        out_nk = pl.pallas_call(
            kernel,
            out_shape=out_shape,
            grid=(num_tiles,),
            in_specs=[
                pl.BlockSpec((block_n, L), lambda i: (i, 0)),   # x: streamed tiles
                pl.BlockSpec((L, D), lambda i: (0, 0)),         # W1: pinned
                pl.BlockSpec((1, D), lambda i: (0, 0)),         # b1: pinned
                pl.BlockSpec(w2_block, lambda i: (0, 0)),       # W2 / W2^T: pinned
                b2_spec,                                        # b2: SMEM scalars
            ],
            out_specs=pl.BlockSpec((N, K), lambda i: (0, 0)),   # grid-resident logits/out
            compiler_params=pltpu.CompilerParams(
                dimension_semantics=("arbitrary",),             # softmax couples N tiles
                vmem_limit_bytes=vmem_limit),
            cost_estimate=cost,
        )(x, w1, b1, w2_arg, b2_arg)

    # (K, N) to match torch.transpose(A, 1, 0); for K=1 this is a free reshape.
    return out_nk.T


# -------------------------------- reference --------------------------------


def attention2_ref(x, w1, b1, w2, b2, normalize=True):
    a = jnp.tanh(x @ w1 + b1.reshape(1, -1)) @ w2 + b2.reshape(1, -1)   # (N, K)
    a = a.T                                                              # (K, N)
    return jax.nn.softmax(a, axis=1) if normalize else a


if __name__ == "__main__":
    # Small shapes consistent with the module (defaults L=512, D=128, K=1, scaled down):
    # N instances in the bag, L features, D hidden, K attention heads.
    N, L, D, K = 32, 128, 64, 1

    key = jax.random.PRNGKey(0)
    kx, kw1, kb1, kw2, kb2 = jax.random.split(key, 5)

    x = jax.random.normal(kx, (N, L), dtype=jnp.float32)
    bound1 = 1.0 / (L ** 0.5)
    w1 = jax.random.uniform(kw1, (L, D), jnp.float32, -bound1, bound1)
    b1 = jax.random.uniform(kb1, (D,), jnp.float32, -bound1, bound1)
    bound2 = 1.0 / (D ** 0.5)
    w2 = jax.random.uniform(kw2, (D, K), jnp.float32, -bound2, bound2)
    b2 = jax.random.uniform(kb2, (K,), jnp.float32, -bound2, bound2)

    ref = attention2_ref(x, w1, b1, w2, b2)

    # Path 1: single block, no grid.
    out_single = jax.block_until_ready(attention2_pallas(x, w1, b1, w2, b2))
    # Path 2: N tiled with a grid (exercised here with a small tile).
    out_tiled = jax.block_until_ready(
        attention2_pallas(x, w1, b1, w2, b2, block_n=8))

    assert out_single.shape == (K, N), out_single.shape
    assert out_tiled.shape == (K, N), out_tiled.shape
    assert jnp.allclose(out_single, ref, atol=1e-5, rtol=1e-5)
    assert jnp.allclose(out_tiled, ref, atol=1e-5, rtol=1e-5)
    print("KERNEL_OK")
</pallas_src>

<mosaic_0001>
module attributes {stable_mosaic.version = 11 : i64} {
  func.func @_attention2_kernel_single(%arg0: memref<32x128xf32, #tpu.memory_space<vmem>>, %arg1: memref<128x64xf32, #tpu.memory_space<vmem>>, %arg2: memref<1x64xf32, #tpu.memory_space<vmem>>, %arg3: memref<1x64xf32, #tpu.memory_space<vmem>>, %arg4: memref<1xf32, #tpu.memory_space<smem>>, %arg5: memref<32x1xf32, #tpu.memory_space<vmem>>) attributes {dimension_semantics = [], scalar_prefetch = 0 : i64, scratch_operands = 0 : i64, tpu.core_type = #tpu.core_type<tc>} {
    %c0 = arith.constant 0 : index
    %c0_0 = arith.constant 0 : index
    %0 = vector.load %arg0[%c0, %c0_0] : memref<32x128xf32, #tpu.memory_space<vmem>>, vector<32x128xf32>
    %c0_1 = arith.constant 0 : index
    %c0_2 = arith.constant 0 : index
    %1 = vector.load %arg1[%c0_1, %c0_2] : memref<128x64xf32, #tpu.memory_space<vmem>>, vector<128x64xf32>
    %cst = arith.constant dense<0.000000e+00> : vector<32x64xf32>
    %2 = tpu.matmul %0, %1, %cst {dimension_numbers = #tpu.dot_dimension_numbers<[1], [0], [0], [1], [0, 0, 1, 1], [], []>} : vector<32x128xf32>, vector<128x64xf32>, vector<32x64xf32> -> vector<32x64xf32>
    %c0_3 = arith.constant 0 : index
    %c0_4 = arith.constant 0 : index
    %3 = vector.load %arg2[%c0_3, %c0_4] : memref<1x64xf32, #tpu.memory_space<vmem>>, vector<1x64xf32>
    %4 = vector.broadcast %3 : vector<1x64xf32> to vector<32x64xf32>
    %5 = arith.addf %2, %4 : vector<32x64xf32>
    %6 = math.tanh %5 : vector<32x64xf32>
    %c0_5 = arith.constant 0 : index
    %c0_6 = arith.constant 0 : index
    %7 = vector.load %arg3[%c0_5, %c0_6] : memref<1x64xf32, #tpu.memory_space<vmem>>, vector<1x64xf32>
    %8 = vector.broadcast %7 : vector<1x64xf32> to vector<32x64xf32>
    %9 = arith.mulf %6, %8 : vector<32x64xf32>
    %cst_7 = arith.constant dense<0.000000e+00> : vector<32xf32>
    %10 = vector.multi_reduction <add>, %9, %cst_7 [1] : vector<32x64xf32> to vector<32xf32>
    %11 = vector.shape_cast %10 : vector<32xf32> to vector<32x1xf32>
    %c0_8 = arith.constant 0 : index
    %12 = memref.load %arg4[%c0_8] : memref<1xf32, #tpu.memory_space<smem>>
    %13 = vector.broadcast %12 : f32 to vector<32x1xf32>
    %14 = arith.addf %11, %13 : vector<32x1xf32>
    %cst_9 = arith.constant dense<0xFF800000> : vector<1xf32>
    %15 = vector.multi_reduction <maximumf>, %14, %cst_9 [0] : vector<32x1xf32> to vector<1xf32>
    %16 = vector.shape_cast %15 : vector<1xf32> to vector<1x1xf32>
    %17 = vector.broadcast %16 : vector<1x1xf32> to vector<32x1xf32>
    %18 = arith.subf %14, %17 : vector<32x1xf32>
    %19 = math.exp %18 : vector<32x1xf32>
    %cst_10 = arith.constant dense<0.000000e+00> : vector<1xf32>
    %20 = vector.multi_reduction <add>, %19, %cst_10 [0] : vector<32x1xf32> to vector<1xf32>
    %21 = vector.shape_cast %20 : vector<1xf32> to vector<1x1xf32>
    %22 = tpu.reciprocal %21 : vector<1x1xf32> -> vector<1x1xf32>
    %23 = vector.broadcast %22 : vector<1x1xf32> to vector<32x1xf32>
    %24 = arith.mulf %19, %23 : vector<32x1xf32>
    %c0_11 = arith.constant 0 : index
    %c0_12 = arith.constant 0 : index
    %25 = vector.load %arg5[%c0_11, %c0_12] : memref<32x1xf32, #tpu.memory_space<vmem>>, vector<32x1xf32>
    tpu.vector_store %arg5[%c0_11, %c0_12], %24 {strides = array<i32>} : memref<32x1xf32, #tpu.memory_space<vmem>>, vector<32x1xf32>,
    return
  }
}

</mosaic_0001>

<llo_original>
// kernel: tpu_custom_call.1
$region0: #{tpu_custom_call.1}
  #allocation0 [shape = 'u32[]', space=smem, size = 0x4, offset = 0x4, fixed_abs, tag = 'smem constant byte address 0x4 - core index']
  #allocation1 [shape = 'u32[144,128]{1,0:T(1,128)}', space=vmem, size = 0x12000, scoped, tag = 'internal scratch']
  #allocation2 [shape = 'f32[1]{0:T(128)S(6)}', space=smem, size = 0x200, scoped, tag = 'scoped memory for tpu_custom_call.1']
  %s0 = inlined_call_operand.vmem [shape: f32[32,128], index: 0, kind: input, shape index: {}]
  %s1 = inlined_call_operand.vmem [shape: f32[128,64], index: 1, kind: input, shape index: {}]
  %s2 = inlined_call_operand.vmem [shape: f32[1,64], index: 2, kind: input, shape index: {}]
  %s3 = inlined_call_operand.vmem [shape: f32[1,64], index: 3, kind: input, shape index: {}]
  %s4 = inlined_call_operand.<no memory space> [shape: f32[1], index: 4, kind: input, shape index: {}]
  %s5 = inlined_call_operand.vmem [shape: f32[32,1], index: 5, kind: output, shape index: {}]
  %s6 = sld [smem:[#allocation0]]
  $region30: #{tpu_custom_call.1} parent=0
    _
  %s8 = ssub.s32 1, %s6
  %s9 = scalar_select 0, %s8, %s6
  %10 = sst [smem:[#allocation2]] %s4
  // Predicated region
  $region2: #{tpu_custom_call.1} parent=0 // pred_check
    _
  $region3: #{tpu_custom_call.1} parent=0 // pred_check_branch
    %12 = sbr.rel (0) target = $region5
  $region4: #{tpu_custom_call.1} parent=0 // pred_region
    _
  $region5: #{tpu_custom_call.1} parent=0 // pred_fallthru
    _
  // Predicated region
  $region6: #{tpu_custom_call.1} parent=0 // pred_check
    _
  $region7: #{tpu_custom_call.1} parent=0 // pred_check_branch
    %14 = sbr.rel (0) target = $region9
  $region8: #{tpu_custom_call.1} parent=0 // pred_region
    _
  $region9: #{tpu_custom_call.1} parent=0 // pred_fallthru
    _
  // Predicated region
  $region10: #{tpu_custom_call.1} parent=0 // pred_check
    _
  $region11: #{tpu_custom_call.1} parent=0 // pred_check_branch
    %16 = sbr.rel (0) target = $region13
  $region12: #{tpu_custom_call.1} parent=0 // pred_region
    _
  $region13: #{tpu_custom_call.1} parent=0 // pred_fallthru
    _
  // Predicated region
  $region14: #{tpu_custom_call.1} parent=0 // pred_check
    _
  $region15: #{tpu_custom_call.1} parent=0 // pred_check_branch
    %18 = sbr.rel (0) target = $region17
  $region16: #{tpu_custom_call.1} parent=0 // pred_region
    _
  $region17: #{tpu_custom_call.1} parent=0 // pred_fallthru
    _
  // Predicated region
  $region18: #{tpu_custom_call.1} parent=0 // pred_check
    _
  $region19: #{tpu_custom_call.1} parent=0 // pred_check_branch
    %20 = sbr.rel (0) target = $region21
  $region20: #{tpu_custom_call.1} parent=0 // pred_region
    _
  $region21: #{tpu_custom_call.1} parent=0 // pred_fallthru
    _
  %v21 = vld [vmem:[%s0] sm:$0xff]
  %v22 = vld [vmem:[%s0 + $0x8] sm:$0xff]
  %v23 = vld [vmem:[%s0 + $0x10] sm:$0xff]
  %v24 = vld [vmem:[%s0 + $0x18] sm:$0xff]
  %v25 = vld [vmem:[%s1] sm:$0xff]
  %v26 = vld [vmem:[%s1 + $0x8] sm:$0xff]
  %v27 = vld [vmem:[%s1 + $0x10] sm:$0xff]
  %v28 = vld [vmem:[%s1 + $0x18] sm:$0xff]
  %v29 = vld [vmem:[%s1 + $0x20] sm:$0xff]
  %v30 = vld [vmem:[%s1 + $0x28] sm:$0xff]
  %v31 = vld [vmem:[%s1 + $0x30] sm:$0xff]
  %v32 = vld [vmem:[%s1 + $0x38] sm:$0xff]
  %v33 = vld [vmem:[%s1 + $0x40] sm:$0xff]
  %v34 = vld [vmem:[%s1 + $0x48] sm:$0xff]
  %v35 = vld [vmem:[%s1 + $0x50] sm:$0xff]
  %v36 = vld [vmem:[%s1 + $0x58] sm:$0xff]
  %v37 = vld [vmem:[%s1 + $0x60] sm:$0xff]
  %v38 = vld [vmem:[%s1 + $0x68] sm:$0xff]
  %v39 = vld [vmem:[%s1 + $0x70] sm:$0xff]
  %v40 = vld [vmem:[%s1 + $0x78] sm:$0xff]
  %v41 = vld [vmem:[%s2] sm:$0x1]
  %v43 = vlaneseq
  %v44 = vshrl.u32 %v43, 7
  %v45 = vsub.s32 0, %v44
  %v46 = vrot.slane %v41, %v45
  %48 = vmatprep.subr.mxu0 0.0
  %49 = vmatpush1.msra.mxu0 %v40
  %50 = vmatprep.subr.mxu0 0.0
  %51 = vmatpush1.msra.mxu0 %v39
  %52 = vmatprep.subr.mxu0 0.0
  %53 = vmatpush1.msra.mxu0 %v38
  %54 = vmatprep.subr.mxu0 0.0
  %55 = vmatpush1.msra.mxu0 %v37
  %56 = vmatprep.subr.mxu0 0.0
  %57 = vmatpush1.msra.mxu0 %v36
  %58 = vmatprep.subr.mxu0 0.0
  %59 = vmatpush1.msra.mxu0 %v35
  %60 = vmatprep.subr.mxu0 0.0
  %61 = vmatpush1.msra.mxu0 %v34
  %62 = vmatprep.subr.mxu0 0.0
  %63 = vmatpush1.msra.mxu0 %v33
  %64 = vmatprep.subr.mxu0 0.0
  %65 = vmatpush1.msra.mxu0 %v32
  %66 = vmatprep.subr.mxu0 0.0
  %67 = vmatpush1.msra.mxu0 %v31
  %68 = vmatprep.subr.mxu0 0.0
  %69 = vmatpush1.msra.mxu0 %v30
  %70 = vmatprep.subr.mxu0 0.0
  %71 = vmatpush1.msra.mxu0 %v29
  %72 = vmatprep.subr.mxu0 0.0
  %73 = vmatpush1.msra.mxu0 %v28
  %74 = vmatprep.subr.mxu0 0.0
  %75 = vmatpush1.msra.mxu0 %v27
  %76 = vmatprep.subr.mxu0 0.0
  %77 = vmatpush1.msra.mxu0 %v26
  %78 = vmatprep.subr.mxu0 0.0
  %79 = vmatpush1.msra.mxu0 %v25
  %80 = vmatprep.subr.mxu0 0.0
  %81 = vmatpush2.msra.mxu0 0.0
  %82 = vmatprep.subr.mxu0 0.0
  %83 = vmatpush2.msra.mxu0 0.0
  %84 = vmatprep.subr.mxu0 0.0
  %85 = vmatpush2.msra.mxu0 0.0
  %86 = vmatprep.subr.mxu0 0.0
  %87 = vmatpush2.msra.mxu0 0.0
  %88 = vmatprep.subr.mxu0 0.0
  %89 = vmatpush2.msra.mxu0 0.0
  %90 = vmatprep.subr.mxu0 0.0
  %91 = vmatpush2.msra.mxu0 0.0
  %92 = vmatprep.subr.mxu0 0.0
  %93 = vmatpush2.msra.mxu0 0.0
  %94 = vmatprep.subr.mxu0 0.0
  %95 = vmatpush2.msra.mxu0 0.0
  %96 = vmatprep.subr.mxu0 0.0
  %97 = vmatpush2.msra.mxu0 0.0
  %98 = vmatprep.subr.mxu0 0.0
  %99 = vmatpush2.msra.mxu0 0.0
  %100 = vmatprep.subr.mxu0 0.0
  %101 = vmatpush2.msra.mxu0 0.0
  %102 = vmatprep.subr.mxu0 0.0
  %103 = vmatpush2.msra.mxu0 0.0
  %104 = vmatprep.subr.mxu0 0.0
  %105 = vmatpush2.msra.mxu0 0.0
  %106 = vmatprep.subr.mxu0 0.0
  %107 = vmatpush2.msra.mxu0 0.0
  %108 = vmatprep.subr.mxu0 0.0
  %109 = vmatpush2.msra.mxu0 0.0
  %110 = vmatprep.subr.mxu0 0.0
  %111 = vmatpush2.msra.mxu0 0.0
  %112 = vmatprep.mubr.f32.mxu0 0.0
  %113 = vmatmul.mubr.f32.gmra.mxu0 %v21
  %v114 = vpop.f32.mrf.mxu0
  %v115 = vadd.f32 %v46, %v114
  %v116 = vpop.f32.mrf.mxu0
  %117 = vmatprep.mubr.f32.mxu0 0.0
  %118 = vmatmul.mubr.f32.gmra.mxu0 %v22
  %v119 = vpop.f32.mrf.mxu0
  %v120 = vadd.f32 %v46, %v119
  %v121 = vpop.f32.mrf.mxu0
  %122 = vmatprep.mubr.f32.mxu0 0.0
  %123 = vmatmul.mubr.f32.gmra.mxu0 %v23
  %v124 = vpop.f32.mrf.mxu0
  %v125 = vadd.f32 %v46, %v124
  %v126 = vpop.f32.mrf.mxu0
  %127 = vmatprep.mubr.f32.mxu0 0.0
  %128 = vmatmul.mubr.f32.gmra.mxu0 %v24
  %v129 = vpop.f32.mrf.mxu0
  %v130 = vadd.f32 %v46, %v129
  %v131 = vpop.f32.mrf.mxu0
  %132 = vdwg.mxu0
  %v133 = vtanh.pop %v115
  %v134 = vtanh.pop %v120
  %v135 = vtanh.pop %v125
  %v136 = vtanh.pop %v130
  %v137 = vld [vmem:[%s3] sm:$0x1]
  %v139 = vlaneseq
  %v140 = vshrl.u32 %v139, 7
  %v141 = vsub.s32 0, %v140
  %v142 = vrot.slane %v137, %v141
  %v144 = vmul.f32 %v133, %v142
  %v145 = vmul.f32 %v134, %v142
  %v146 = vmul.f32 %v135, %v142
  %v147 = vmul.f32 %v136, %v142
  %vm148 = vcmask 523264
  %v149 = vsel %vm148, %v144, 0.0
  %150 = vadd.xlane.f32.xlu0 %v149
  %v151 = vpop.xlane.xlu0 %150
  %v152 = vsel %vm148, %v145, 0.0
  %153 = vadd.xlane.f32.xlu0 %v152
  %v154 = vpop.xlane.xlu0 %153
  %v155 = vsel %vm148, %v146, 0.0
  %156 = vadd.xlane.f32.xlu0 %v155
  %v157 = vpop.xlane.xlu0 %156
  %v158 = vsel %vm148, %v147, 0.0
  %159 = vadd.xlane.f32.xlu0 %v158
  %v160 = vpop.xlane.xlu0 %159
  %s161 = sld [smem:[#allocation2]]
  %v162 = vstv %s161
  %v163 = vadd.f32 %v151, %v162
  %v164 = vadd.f32 %v154, %v162
  %v165 = vadd.f32 %v157, %v162
  %v166 = vadd.f32 %v160, %v162
  %v167 = vmax.f32 %v163, %v164
  %v168 = vmax.f32 %v165, %v166
  %v169 = vmax.f32 %v167, %v168
  %v170 = vrot.slane %v169, 4
  %v171 = vmax.f32 %v169, %v170
  %v172 = vrot.slane %v171, 2
  %v173 = vmax.f32 %v171, %v172
  %v174 = vrot.slane %v173, 1
  %v175 = vmax.f32 %v173, %v174
  %v176 = vsub.f32 %v163, %v175
  %v177 = vsub.f32 %v164, %v175
  %v178 = vsub.f32 %v165, %v175
  %v179 = vsub.f32 %v166, %v175
  %v180 = vmul.f32 %v176, 1.442695
  %v181 = vpow.pop %v180
  %v182 = vmul.f32 %v177, 1.442695
  %v183 = vpow.pop %v182
  %v184 = vmul.f32 %v178, 1.442695
  %v185 = vpow.pop %v184
  %v186 = vmul.f32 %v179, 1.442695
  %v187 = vpow.pop %v186
  %v188 = vadd.f32 %v181, %v183
  %v189 = vadd.f32 %v188, %v185
  %v190 = vadd.f32 %v189, %v187
  %v191 = vrot.slane %v190, 4
  %v192 = vadd.f32 %v190, %v191
  %v193 = vrot.slane %v192, 2
  %v194 = vadd.f32 %v192, %v193
  %v195 = vrot.slane %v194, 1
  %v196 = vadd.f32 %v194, %v195
  %v197 = vrcp.pop %v196
  %v198 = vmul.f32 %v181, %v197
  %v199 = vmul.f32 %v183, %v197
  %v200 = vmul.f32 %v185, %v197
  %v201 = vmul.f32 %v187, %v197
  %vm202 = vcmask 7168
  %203 = vst.msk [vmem:[%s5] sm:$0xff] %vm202, %v198
  %204 = vst.msk [vmem:[%s5 + $0x8] sm:$0xff] %vm202, %v199
  %205 = vst.msk [vmem:[%s5 + $0x10] sm:$0xff] %vm202, %v200
  %206 = vst.msk [vmem:[%s5 + $0x18] sm:$0xff] %vm202, %v201
  // Predicated region
  $region22: #{tpu_custom_call.1} parent=0 // pred_check
    _
  $region23: #{tpu_custom_call.1} parent=0 // pred_check_branch
    %208 = sbr.rel (0) target = $region25
  $region24: #{tpu_custom_call.1} parent=0 // pred_region
    _
  $region25: #{tpu_custom_call.1} parent=0 // pred_fallthru
    _
  // Predicated region
  $region26: #{tpu_custom_call.1} parent=0 // pred_check
    _
  $region27: #{tpu_custom_call.1} parent=0 // pred_check_branch
    %210 = sbr.rel (0) target = $region29
  $region28: #{tpu_custom_call.1} parent=0 // pred_region
    _
  $region29: #{tpu_custom_call.1} parent=0 // pred_fallthru
    _

</llo_original>
